<compile_context>
chip_gen: v7x
topology: tpu7x:2x2x1
jax: 0.10.0
libtpu: 0.0.40
codegen_flags: <defaults>
</compile_context>

<pallas_src>
import functools

import numpy as np
import jax
import jax.numpy as jnp
from jax import lax
from jax.experimental import pallas as pl
from jax.experimental.pallas import tpu as pltpu

_EPS = 1e-8  # torch.nn.functional.cosine_similarity default eps
_F32_MIN = float(np.finfo(np.float32).min)

_LANE = 128
_SUBLANE = 8


def _round_up(x, m):
    return ((x + m - 1) // m) * m


def _cdiv(a, b):
    return -(-a // b)


@functools.lru_cache(maxsize=1)
def _budget_params():
    """Generation-aware VMEM budgets (v5e/v6e: 128 MiB VMEM, v7x: 64 MiB/TC)."""
    vmem = None
    try:
        info = pltpu.get_tpu_info()
        for attr in ("vmem_capacity_bytes", "vmem_bytes", "vmem_size_bytes"):
            v = getattr(info, attr, None)
            if v:
                vmem = int(v)
                break
    except Exception:
        vmem = None
    if vmem is None:
        vmem = 64 * 1024 * 1024  # conservative default (v7x per-TC)
    if vmem >= 96 * 1024 * 1024:  # v5e / v6e (128 MiB physical VMEM)
        return {"step_budget": 12 * 1024 * 1024,
                "vmem_limit": 96 * 1024 * 1024,
                "max_l_tile": 1024}
    return {"step_budget": 5 * 1024 * 1024,  # v7x (64 MiB per TC)
            "vmem_limit": 48 * 1024 * 1024,
            "max_l_tile": 512}


def _select_tiles(B, L, d_pad, n_pad):
    p = _budget_params()
    budget = p["step_budget"]
    # per-step VMEM bytes, including the x2 double-buffer factor on every stream
    fixed_per_b = 2 * (n_pad * d_pad + 2 * n_pad) * 4        # profile + aux
    row_per_b = 2 * (2 * d_pad + n_pad) * 4                  # dec + emb + weights per L row

    tl_cap = (budget - fixed_per_b) // max(row_per_b, 1)
    tl_cap = max(_SUBLANE, (tl_cap // _SUBLANE) * _SUBLANE)
    max_tl = min(p["max_l_tile"], tl_cap)
    nl = max(1, _cdiv(L, max_tl))
    tl = _round_up(_cdiv(L, nl), _SUBLANE)

    per_b = fixed_per_b + tl * row_per_b
    bt = int(max(1, min(B, budget // max(per_b, 1))))

    # Keep >= 2 grid programs so both v7x TensorCores get work
    # (one extra ~0.35us pipeline step on single-TC chips: negligible).
    if nl == 1 and bt >= B:
        if B >= 2:
            bt = _cdiv(B, 2)
        elif L > _SUBLANE:
            nl = 2
            tl = _round_up(_cdiv(L, nl), _SUBLANE)

    l_pad = tl * nl
    b_pad = _round_up(B, bt)
    nb = b_pad // bt
    return bt, nb, b_pad, tl, nl, l_pad, p["vmem_limit"]


def _cos_attn_kernel(dec_ref, prof_ref, aux_ref, emb_ref, w_ref):
    dec = dec_ref[...].astype(jnp.float32)     # (Bt, TL, Dp)
    prof = prof_ref[...].astype(jnp.float32)   # (Bt, Np, Dp)
    aux = aux_ref[...]                         # (Bt, 2, Np) f32
    pad = aux[:, 0:1, :] > 0.5                 # (Bt, 1, Np)  True where padded
    inv_pn = aux[:, 1:2, :]                    # (Bt, 1, Np)  1 / max(||profile||, eps)

    eps2 = jnp.float32(_EPS * _EPS)
    # Normalize decoder rows before the matmul (EUP rsqrt):
    dec_n = dec * lax.rsqrt(
        jnp.maximum(jnp.sum(dec * dec, axis=-1, keepdims=True), eps2))

    # cos = (dec / ||dec||) . profile * (1 / ||profile||)  -> (Bt, TL, Np)
    cos = lax.dot_general(
        dec_n, prof,
        dimension_numbers=(((2,), (2,)), ((0,), (0,))),
        preferred_element_type=jnp.float32) * inv_pn

    logits = jnp.where(pad, jnp.float32(_F32_MIN), cos)
    m = jnp.max(logits, axis=-1, keepdims=True)
    e = jnp.exp(logits - m)
    s = jnp.sum(e, axis=-1, keepdims=True)
    w = e * pl.reciprocal(s, approx=False)   # exact: keeps 1e-5 parity with reference
    w = jnp.where(pad, jnp.float32(0.0), w)

    w_ref[...] = w.astype(w_ref.dtype)
    # (Bt, TL, Dp): weights @ (unnormalized) profile, K = Np (multiple of 128).
    emb_ref[...] = lax.dot_general(
        w, prof,
        dimension_numbers=(((2,), (1,)), ((0,), (0,))),
        preferred_element_type=jnp.float32).astype(emb_ref.dtype)


@jax.jit
def _cos_attn_call(dec, profile, lens):
    B, L, D = dec.shape
    N = profile.shape[1]

    # ---- static tile / padding selection ----
    d_pad = _round_up(max(D, _LANE), _LANE)   # lane-dense emb stores, full MXU K
    n_pad = _round_up(max(N, _LANE), _LANE)   # lane-dense weights, full-K 2nd matmul
    bt, nb, b_pad, tl, nl, l_pad, vmem_limit = _select_tiles(B, L, d_pad, n_pad)

    # TODO(synk): N-tiled online-softmax fallback when (n_pad, d_pad) alone
    # exceeds the per-step VMEM budget (huge speaker-profile tables).

    # ---- pad inputs; zero padding is neutral to dots and norms ----
    dec_p = jnp.pad(dec, ((0, b_pad - B), (0, l_pad - L), (0, d_pad - D)))
    prof_p = jnp.pad(profile, ((0, b_pad - B), (0, n_pad - N), (0, d_pad - D)))
    lens_p = jnp.pad(lens.astype(jnp.int32), (0, b_pad - B))

    eps2 = jnp.float32(_EPS * _EPS)
    n_ids = jnp.arange(n_pad, dtype=jnp.int32)
    pad_mask = (n_ids[None, :] >= lens_p[:, None]).astype(jnp.float32)      # (b_pad, Np)
    inv_pn = lax.rsqrt(jnp.maximum(
        jnp.sum(prof_p.astype(jnp.float32) ** 2, axis=-1), eps2))           # (b_pad, Np)
    aux = jnp.stack([pad_mask, inv_pn], axis=1)                             # (b_pad, 2, Np)

    grid_spec = pltpu.PrefetchScalarGridSpec(
        num_scalar_prefetch=0,
        # L tiles innermost -> profile/aux blocks (constant in l) are DMA'd
        # once per batch tile.
        grid=(nb, nl),
        in_specs=[
            pl.BlockSpec((bt, tl, d_pad), lambda b, l: (b, l, 0)),
            pl.BlockSpec((bt, n_pad, d_pad), lambda b, l: (b, 0, 0)),
            pl.BlockSpec((bt, 2, n_pad), lambda b, l: (b, 0, 0)),
        ],
        out_specs=[
            pl.BlockSpec((bt, tl, d_pad), lambda b, l: (b, l, 0)),
            pl.BlockSpec((bt, tl, n_pad), lambda b, l: (b, l, 0)),
        ],
    )

    emb_p, w_p = pl.pallas_call(
        _cos_attn_kernel,
        out_shape=(
            jax.ShapeDtypeStruct((b_pad, l_pad, d_pad), dec.dtype),
            jax.ShapeDtypeStruct((b_pad, l_pad, n_pad), jnp.float32),
        ),
        grid_spec=grid_spec,
        compiler_params=pltpu.CompilerParams(
            dimension_semantics=("parallel", "parallel"),
            vmem_limit_bytes=vmem_limit,
        ),
    )(dec_p, prof_p, aux)

    return emb_p[:B, :L, :D], w_p[:B, :L, :N]


def cosine_distance_attention(spk_decoder_out, profile, profile_lens=None):
    """JAX/Pallas equivalent of CosineDistanceAttention.forward.

    spk_decoder_out: (B, L, D)
    profile:         (B, N, D)
    profile_lens:    optional (B,) int
    Returns (spk_embedding, weights):
      with lens:    ((B, L, D), (B, L, N))
      without lens: ((B, 1, D), (B, 1, N))  (only last decoder step, no mask)
    """
    B = spk_decoder_out.shape[0]
    N = profile.shape[1]
    if profile_lens is None:
        # torch path: x = x[:, -1:, :, :]; no masking (== all N profiles valid).
        dec = spk_decoder_out[:, -1:, :]
        lens = jnp.full((B,), N, dtype=jnp.int32)
        return _cos_attn_call(dec, profile, lens)
    return _cos_attn_call(spk_decoder_out, profile, profile_lens.astype(jnp.int32))


# ----------------------------------------------------------------------------
# Pure-JAX reference for verification
# ----------------------------------------------------------------------------
def _reference(spk_decoder_out, profile, profile_lens=None):
    B, L, D = spk_decoder_out.shape
    N = profile.shape[1]
    if profile_lens is None:
        spk_decoder_out = spk_decoder_out[:, -1:, :]
        mask = jnp.zeros((B, 1, N), dtype=bool)
    else:
        mask = (jnp.arange(N)[None, :] >= profile_lens[:, None])[:, None, :]
    x = spk_decoder_out[:, :, None, :]          # (B, L, 1, D)
    p = profile[:, None, :, :]                  # (B, 1, N, D)
    dot = jnp.sum(x * p, axis=-1)               # (B, L, N)
    nx = jnp.maximum(jnp.linalg.norm(x, axis=-1), _EPS)
    np_ = jnp.maximum(jnp.linalg.norm(p, axis=-1), _EPS)
    cos = dot / (nx * np_)
    logits = jnp.where(mask, _F32_MIN, cos)
    w = jax.nn.softmax(logits, axis=-1)
    w = jnp.where(mask, 0.0, w)
    emb = jnp.einsum("bln,bnd->bld", w, profile)
    return emb, w


if __name__ == "__main__":
    key = jax.random.PRNGKey(0)
    B, L, N, D = 2, 8, 8, 32
    k1, k2 = jax.random.split(key)
    spk_decoder_out = jax.random.normal(k1, (B, L, D), dtype=jnp.float32)
    profile = jax.random.normal(k2, (B, N, D), dtype=jnp.float32)
    profile_lens = jnp.array([5, 8], dtype=jnp.int32)

    # masked path
    emb, w = cosine_distance_attention(spk_decoder_out, profile, profile_lens)
    jax.block_until_ready((emb, w))
    emb_ref, w_ref = _reference(spk_decoder_out, profile, profile_lens)
    assert emb.shape == (B, L, D) and w.shape == (B, L, N)
    np.testing.assert_allclose(np.asarray(w), np.asarray(w_ref), atol=1e-5, rtol=1e-5)
    np.testing.assert_allclose(np.asarray(emb), np.asarray(emb_ref), atol=1e-5, rtol=1e-5)

    # no-lens path (last decoder step only)
    emb2, w2 = cosine_distance_attention(spk_decoder_out, profile, None)
    jax.block_until_ready((emb2, w2))
    emb2_ref, w2_ref = _reference(spk_decoder_out, profile, None)
    assert emb2.shape == (B, 1, D) and w2.shape == (B, 1, N)
    np.testing.assert_allclose(np.asarray(w2), np.asarray(w2_ref), atol=1e-5, rtol=1e-5)
    np.testing.assert_allclose(np.asarray(emb2), np.asarray(emb2_ref), atol=1e-5, rtol=1e-5)

    print("KERNEL_OK")
</pallas_src>

<mosaic_0001>
module attributes {stable_mosaic.version = 11 : i64} {
  func.func @_cos_attn_kernel(%arg0: i32, %arg1: i32, %arg2: memref<1x8x128xf32, #tpu.memory_space<vmem>>, %arg3: memref<1x128x128xf32, #tpu.memory_space<vmem>>, %arg4: memref<1x2x128xf32, #tpu.memory_space<vmem>>, %arg5: memref<1x8x128xf32, #tpu.memory_space<vmem>>, %arg6: memref<1x8x128xf32, #tpu.memory_space<vmem>>) attributes {dimension_semantics = [#tpu.dimension_semantics<parallel>, #tpu.dimension_semantics<parallel>], iteration_bounds = array<i64: 2, 1>, scalar_prefetch = 0 : i64, scratch_operands = 0 : i64, tpu.core_type = #tpu.core_type<tc>, window_params = [{transform_indices = @transform_0, window_bounds = array<i64: 1, 8, 128>}, {transform_indices = @transform_1, window_bounds = array<i64: 1, 128, 128>}, {transform_indices = @transform_2, window_bounds = array<i64: 1, 2, 128>}, {transform_indices = @transform_3, window_bounds = array<i64: 1, 8, 128>}, {transform_indices = @transform_4, window_bounds = array<i64: 1, 8, 128>}]} {
    %c0 = arith.constant 0 : index
    %c0_0 = arith.constant 0 : index
    %c0_1 = arith.constant 0 : index
    %0 = vector.load %arg2[%c0, %c0_0, %c0_1] : memref<1x8x128xf32, #tpu.memory_space<vmem>>, vector<1x8x128xf32>
    %c0_2 = arith.constant 0 : index
    %c0_3 = arith.constant 0 : index
    %c0_4 = arith.constant 0 : index
    %1 = vector.load %arg3[%c0_2, %c0_3, %c0_4] : memref<1x128x128xf32, #tpu.memory_space<vmem>>, vector<1x128x128xf32>
    %c0_5 = arith.constant 0 : index
    %c0_6 = arith.constant 0 : index
    %c0_7 = arith.constant 0 : index
    %2 = vector.load %arg4[%c0_5, %c0_6, %c0_7] : memref<1x2x128xf32, #tpu.memory_space<vmem>>, vector<1x2x128xf32>
    %3 = vector.extract_strided_slice %2 {offsets = [0, 0, 0], sizes = [1, 1, 128], strides = [1, 1, 1]} : vector<1x2x128xf32> to vector<1x1x128xf32>
    %cst = arith.constant 5.000000e-01 : f32
    %4 = vector.broadcast %cst : f32 to vector<1x1x128xf32>
    %5 = arith.cmpf ogt, %3, %4 : vector<1x1x128xf32>
    %6 = vector.extract_strided_slice %2 {offsets = [0, 1, 0], sizes = [1, 1, 128], strides = [1, 1, 1]} : vector<1x2x128xf32> to vector<1x1x128xf32>
    %7 = arith.mulf %0, %0 : vector<1x8x128xf32>
    %cst_8 = arith.constant dense<0.000000e+00> : vector<1x8xf32>
    %8 = vector.multi_reduction <add>, %7, %cst_8 [2] : vector<1x8x128xf32> to vector<1x8xf32>
    %9 = vector.shape_cast %8 : vector<1x8xf32> to vector<1x8x1xf32>
    %cst_9 = arith.constant 1.000000e-16 : f32
    %10 = vector.broadcast %cst_9 : f32 to vector<1x8x1xf32>
    %11 = arith.maximumf %9, %10 : vector<1x8x1xf32>
    %12 = math.rsqrt %11 : vector<1x8x1xf32>
    %13 = vector.broadcast %12 : vector<1x8x1xf32> to vector<1x8x128xf32>
    %14 = arith.mulf %0, %13 : vector<1x8x128xf32>
    %cst_10 = arith.constant dense<0.000000e+00> : vector<1x8x128xf32>
    %15 = tpu.matmul %14, %1, %cst_10 {dimension_numbers = #tpu.dot_dimension_numbers<[2], [2], [1], [1], [0, 0, 0, 1, 1, 1], [0], [0]>} : vector<1x8x128xf32>, vector<1x128x128xf32>, vector<1x8x128xf32> -> vector<1x8x128xf32>
    %16 = vector.broadcast %6 : vector<1x1x128xf32> to vector<1x8x128xf32>
    %17 = arith.mulf %15, %16 : vector<1x8x128xf32>
    %cst_11 = arith.constant -3.40282347E+38 : f32
    %18 = vector.shape_cast %5 : vector<1x1x128xi1> to vector<1x1x128xi1>
    %19 = vector.broadcast %18 : vector<1x1x128xi1> to vector<1x8x128xi1>
    %20 = vector.broadcast %cst_11 : f32 to vector<1x8x128xf32>
    %21 = arith.select %19, %20, %17 : vector<1x8x128xi1>, vector<1x8x128xf32>
    %cst_12 = arith.constant dense<0xFF800000> : vector<1x8xf32>
    %22 = vector.multi_reduction <maximumf>, %21, %cst_12 [2] : vector<1x8x128xf32> to vector<1x8xf32>
    %23 = vector.shape_cast %22 : vector<1x8xf32> to vector<1x8x1xf32>
    %24 = vector.broadcast %23 : vector<1x8x1xf32> to vector<1x8x128xf32>
    %25 = arith.subf %21, %24 : vector<1x8x128xf32>
    %26 = math.exp %25 : vector<1x8x128xf32>
    %cst_13 = arith.constant dense<0.000000e+00> : vector<1x8xf32>
    %27 = vector.multi_reduction <add>, %26, %cst_13 [2] : vector<1x8x128xf32> to vector<1x8xf32>
    %28 = vector.shape_cast %27 : vector<1x8xf32> to vector<1x8x1xf32>
    %29 = tpu.reciprocal %28 : vector<1x8x1xf32> -> vector<1x8x1xf32>
    %30 = vector.broadcast %29 : vector<1x8x1xf32> to vector<1x8x128xf32>
    %31 = arith.mulf %26, %30 : vector<1x8x128xf32>
    %cst_14 = arith.constant 0.000000e+00 : f32
    %32 = vector.shape_cast %5 : vector<1x1x128xi1> to vector<1x1x128xi1>
    %33 = vector.broadcast %32 : vector<1x1x128xi1> to vector<1x8x128xi1>
    %34 = vector.broadcast %cst_14 : f32 to vector<1x8x128xf32>
    %35 = arith.select %33, %34, %31 : vector<1x8x128xi1>, vector<1x8x128xf32>
    %c0_15 = arith.constant 0 : index
    %c0_16 = arith.constant 0 : index
    %c0_17 = arith.constant 0 : index
    %36 = vector.load %arg6[%c0_15, %c0_16, %c0_17] : memref<1x8x128xf32, #tpu.memory_space<vmem>>, vector<1x8x128xf32>
    tpu.vector_store %arg6[%c0_15, %c0_16, %c0_17], %35 {strides = array<i32>} : memref<1x8x128xf32, #tpu.memory_space<vmem>>, vector<1x8x128xf32>,
    %cst_18 = arith.constant dense<0.000000e+00> : vector<1x8x128xf32>
    %37 = tpu.matmul %35, %1, %cst_18 {dimension_numbers = #tpu.dot_dimension_numbers<[2], [1], [1], [2], [0, 0, 0, 1, 1, 2], [0], [0]>} : vector<1x8x128xf32>, vector<1x128x128xf32>, vector<1x8x128xf32> -> vector<1x8x128xf32>
    %c0_19 = arith.constant 0 : index
    %c0_20 = arith.constant 0 : index
    %c0_21 = arith.constant 0 : index
    %38 = vector.load %arg5[%c0_19, %c0_20, %c0_21] : memref<1x8x128xf32, #tpu.memory_space<vmem>>, vector<1x8x128xf32>
    tpu.vector_store %arg5[%c0_19, %c0_20, %c0_21], %37 {strides = array<i32>} : memref<1x8x128xf32, #tpu.memory_space<vmem>>, vector<1x8x128xf32>,
    return
  }
  func.func @transform_0(%arg0: i32, %arg1: i32) -> (i32, i32, i32) {
    %c0_i32 = arith.constant 0 : i32
    %c0_i32_0 = arith.constant 0 : i32
    return %arg0, %arg1, %c0_i32 : i32, i32, i32
  }
  func.func @transform_1(%arg0: i32, %arg1: i32) -> (i32, i32, i32) {
    %c0_i32 = arith.constant 0 : i32
    %c0_i32_0 = arith.constant 0 : i32
    %c0_i32_1 = arith.constant 0 : i32
    return %arg0, %c0_i32, %c0_i32_0 : i32, i32, i32
  }
  func.func @transform_2(%arg0: i32, %arg1: i32) -> (i32, i32, i32) {
    %c0_i32 = arith.constant 0 : i32
    %c0_i32_0 = arith.constant 0 : i32
    %c0_i32_1 = arith.constant 0 : i32
    return %arg0, %c0_i32, %c0_i32_0 : i32, i32, i32
  }
  func.func @transform_3(%arg0: i32, %arg1: i32) -> (i32, i32, i32) {
    %c0_i32 = arith.constant 0 : i32
    %c0_i32_0 = arith.constant 0 : i32
    return %arg0, %arg1, %c0_i32 : i32, i32, i32
  }
  func.func @transform_4(%arg0: i32, %arg1: i32) -> (i32, i32, i32) {
    %c0_i32 = arith.constant 0 : i32
    %c0_i32_0 = arith.constant 0 : i32
    return %arg0, %arg1, %c0_i32 : i32, i32, i32
  }
}

</mosaic_0001>

<llo_original>
// kernel: _cos_attn_call.1
$region0: #{_cos_attn_call.1}
  #allocation0 [shape = 'u32[]', space=smem, size = 0x4, offset = 0x4, fixed_abs, tag = 'smem constant byte address 0x4 - core index']
  #allocation1 [shape = 'u32[144,128]{1,0:T(1,128)}', space=vmem, size = 0x12000, scoped, tag = 'internal scratch']
  %s0 = inlined_call_operand.vmem [shape: f32[2,8,128], index: 0, kind: input, shape index: {}]
  %s1 = inlined_call_operand.vmem [shape: f32[2,128,128], index: 1, kind: input, shape index: {}]
  %s2 = inlined_call_operand.vmem [shape: f32[2,2,128], index: 2, kind: input, shape index: {}]
  %s3 = inlined_call_operand.hbm [shape: f32[2,8,128], index: 3, kind: output, shape index: {0}]
  %s4 = inlined_call_operand.hbm [shape: f32[2,8,128], index: 4, kind: output, shape index: {1}]
  %5 = xla_tuple %s3, %s4
  %s6 = sld [smem:[#allocation0]]
  $region53: #{_cos_attn_call.1} parent=0
    _
  %s8 = ssub.s32 1, %s6
  %s9 = scalar_select 0, %s8, %s6
  $region1: #{_cos_attn_call.1} parent=0
    #allocation2 [shape = 'u8[8192]{0}', space=vmem, size = 0x2000, scoped, tag = 'output window, operand 0']
    #allocation3 [shape = 's32[2]{0}', space=sflag, size = 0x8, scoped, tag = 'scoped memory for _cos_attn_call.1']
    #allocation4 [shape = 'u8[8192]{0}', space=vmem, size = 0x2000, scoped, tag = 'output window, operand 1']
    #allocation5 [shape = 's32[2]{0}', space=sflag, size = 0x8, scoped, tag = 'scoped memory for _cos_attn_call.1']
    %10 = vsyncpa [#allocation3], 0
    %s11 = scalar_lea.sflag [#allocation3], 1
    %12 = vsyncpa %s11, 0
    %13 = vsyncpa [#allocation5], 0
    %s14 = scalar_lea.sflag [#allocation5], 1
    %15 = vsyncpa %s14, 0
    loop: start=0, step=1, limit=4
    $region2: #{_cos_attn_call.1} parent=1 // loop_pre_header
      _
    $region3: #{_cos_attn_call.1} parent=1 // loop_header
      %s17 = sphi 0, %s21
      %p18 = scmp.ge.s32.totalorder %s17, 4
      %s24 = sphi 0, %s36
      %s25 = sphi 0, %s32
      %s26 = sphi 0, %s24
      %s27 = sphi 0, %s25
      %s28 = sphi 0, %s26
      %s29 = sphi 0, %s27
      %s41 = sphi 0, %s43
      %s44 = sphi 0, %s41
      %s45 = sphi 0, %s44
      %s61 = sphi 0, %s45
      %s67 = sphi 0, %s69
      %s70 = sphi 0, %s67
      %s71 = sphi 0, %s70
      %s87 = sphi 0, %s71
      %s93 = sphi 0, %s95
      %s96 = sphi 0, %s93
      %s97 = sphi 0, %s96
      %s113 = sphi 0, %s97
      %s121 = sphi 0, %s123
      %s124 = sphi 0, %s121
      %s125 = sphi 0, %s124
      %s141 = sphi 0, %s125
      %s149 = sphi 0, %s151
      %s152 = sphi 0, %s149
      %s153 = sphi 0, %s152
      %s169 = sphi 0, %s153
    $region4: #{_cos_attn_call.1} parent=1 // loop_header_branch
      %20 = sbr.rel (%p18) target = $region8
    $region5: #{_cos_attn_call.1} parent=1 // loop_body
      %s22 = ssub.s32 %s17, 1
      %s23 = ssub.s32 %s17, 2
      %s30 = sadd.s32 1, %s25
      %p31 = scmp.ge.s32.totalorder %s30, 1
      %s32 = scalar_select %p31, 0, %s30
      %s33 = sadd.s32 1, %s24
      %s34 = scalar_select %p31, %s33, %s24
      %p35 = scmp.ge.s32.totalorder %s34, 2
      %s36 = scalar_select %p35, 0, %s34
      %s37 = ssub.s32 %s24, %s36
      %s38 = ssub.s32 %s25, %s32
      %s39 = sor.u32 %s37, %s38
      %p40 = scmp.eq.s32.totalorder %s39, 0
      %s42 = sadd.s32 %s41, 1
      %s43 = scalar_select %p40, %s41, %s42
      %p46 = pneg %p40
      %p47 = scmp.eq.s32.totalorder %s17, 1
      %p48 = por %p46, %p47
      %p49 = scmp.ne.s32.totalorder %s41, %s44
      %p50 = scmp.eq.s32.totalorder %s17, 0
      %p51 = por %p49, %p50
      %p52 = scmp.ne.s32.totalorder %s41, %s44
      %p53 = scmp.eq.s32.totalorder %s22, 1
      %p54 = por %p52, %p53
      %p55 = scmp.ne.s32.totalorder %s44, %s45
      %p56 = scmp.eq.s32.totalorder %s22, 0
      %p57 = por %p55, %p56
      %p58 = scmp.ne.s32.totalorder %s44, %s45
      %p59 = scmp.eq.s32.totalorder %s23, 1
      %p60 = por %p58, %p59
      %p62 = scmp.ne.s32.totalorder %s45, %s61
      %p63 = scmp.eq.s32.totalorder %s23, 0
      %p64 = por %p62, %p63
      %s65 = ssub.s32 %s24, %s36
      %p66 = scmp.eq.s32.totalorder %s65, 0
      %s68 = sadd.s32 %s67, 1
      %s69 = scalar_select %p66, %s67, %s68
      %p72 = pneg %p66
      %p73 = scmp.eq.s32.totalorder %s17, 1
      %p74 = por %p72, %p73
      %p75 = scmp.ne.s32.totalorder %s67, %s70
      %p76 = scmp.eq.s32.totalorder %s17, 0
      %p77 = por %p75, %p76
      %p78 = scmp.ne.s32.totalorder %s67, %s70
      %p79 = scmp.eq.s32.totalorder %s22, 1
      %p80 = por %p78, %p79
      %p81 = scmp.ne.s32.totalorder %s70, %s71
      %p82 = scmp.eq.s32.totalorder %s22, 0
      %p83 = por %p81, %p82
      %p84 = scmp.ne.s32.totalorder %s70, %s71
      %p85 = scmp.eq.s32.totalorder %s23, 1
      %p86 = por %p84, %p85
      %p88 = scmp.ne.s32.totalorder %s71, %s87
      %p89 = scmp.eq.s32.totalorder %s23, 0
      %p90 = por %p88, %p89
      %s91 = ssub.s32 %s24, %s36
      %p92 = scmp.eq.s32.totalorder %s91, 0
      %s94 = sadd.s32 %s93, 1
      %s95 = scalar_select %p92, %s93, %s94
      %p98 = pneg %p92
      %p99 = scmp.eq.s32.totalorder %s17, 1
      %p100 = por %p98, %p99
      %p101 = scmp.ne.s32.totalorder %s93, %s96
      %p102 = scmp.eq.s32.totalorder %s17, 0
      %p103 = por %p101, %p102
      %p104 = scmp.ne.s32.totalorder %s93, %s96
      %p105 = scmp.eq.s32.totalorder %s22, 1
      %p106 = por %p104, %p105
      %p107 = scmp.ne.s32.totalorder %s96, %s97
      %p108 = scmp.eq.s32.totalorder %s22, 0
      %p109 = por %p107, %p108
      %p110 = scmp.ne.s32.totalorder %s96, %s97
      %p111 = scmp.eq.s32.totalorder %s23, 1
      %p112 = por %p110, %p111
      %p114 = scmp.ne.s32.totalorder %s97, %s113
      %p115 = scmp.eq.s32.totalorder %s23, 0
      %p116 = por %p114, %p115
      %s117 = ssub.s32 %s24, %s36
      %s118 = ssub.s32 %s25, %s32
      %s119 = sor.u32 %s117, %s118
      %p120 = scmp.eq.s32.totalorder %s119, 0
      %s122 = sadd.s32 %s121, 1
      %s123 = scalar_select %p120, %s121, %s122
      %p126 = pneg %p120
      %p127 = scmp.eq.s32.totalorder %s17, 1
      %p128 = por %p126, %p127
      %p129 = scmp.ne.s32.totalorder %s121, %s124
      %p130 = scmp.eq.s32.totalorder %s17, 0
      %p131 = por %p129, %p130
      %p132 = scmp.ne.s32.totalorder %s121, %s124
      %p133 = scmp.eq.s32.totalorder %s22, 1
      %p134 = por %p132, %p133
      %p135 = scmp.ne.s32.totalorder %s124, %s125
      %p136 = scmp.eq.s32.totalorder %s22, 0
      %p137 = por %p135, %p136
      %p138 = scmp.ne.s32.totalorder %s124, %s125
      %p139 = scmp.eq.s32.totalorder %s23, 1
      %p140 = por %p138, %p139
      %p142 = scmp.ne.s32.totalorder %s125, %s141
      %p143 = scmp.eq.s32.totalorder %s23, 0
      %p144 = por %p142, %p143
      %s145 = ssub.s32 %s24, %s36
      %s146 = ssub.s32 %s25, %s32
      %s147 = sor.u32 %s145, %s146
      %p148 = scmp.eq.s32.totalorder %s147, 0
      %s150 = sadd.s32 %s149, 1
      %s151 = scalar_select %p148, %s149, %s150
      %p154 = pneg %p148
      %p155 = scmp.eq.s32.totalorder %s17, 1
      %p156 = por %p154, %p155
      %p157 = scmp.ne.s32.totalorder %s149, %s152
      %p158 = scmp.eq.s32.totalorder %s17, 0
      %p159 = por %p157, %p158
      %p160 = scmp.ne.s32.totalorder %s149, %s152
      %p161 = scmp.eq.s32.totalorder %s22, 1
      %p162 = por %p160, %p161
      %p163 = scmp.ne.s32.totalorder %s152, %s153
      %p164 = scmp.eq.s32.totalorder %s22, 0
      %p165 = por %p163, %p164
      %p166 = scmp.ne.s32.totalorder %s152, %s153
      %p167 = scmp.eq.s32.totalorder %s23, 1
      %p168 = por %p166, %p167
      %p170 = scmp.ne.s32.totalorder %s153, %s169
      %p171 = scmp.eq.s32.totalorder %s23, 0
      %p172 = por %p170, %p171
      %p173 = scmp.le.s32.totalorder 1, %s17
      %p174 = scmp.lt.s32.totalorder %s17, 3
      %p175 = pnand %p173, %p174
      %p176 = pneg %p175
      // Predicated region
      $region9: #{_cos_attn_call.1} parent=5 // pred_check
        _
      $region10: #{_cos_attn_call.1} parent=5 // pred_check_branch
        %178 = sbr.rel (%p175) target = $region12
      $region11: #{_cos_attn_call.1} parent=5 // pred_region
        %s179 = ssub.s32 %s17, 1
      $region12: #{_cos_attn_call.1} parent=5 // pred_fallthru
        _
      %p180 = scmp.lt.s32.totalorder %s17, 2
      // Predicated region
      $region13: #{_cos_attn_call.1} parent=5 // pred_check
        %p181 = pneg %p180
      $region14: #{_cos_attn_call.1} parent=5 // pred_check_branch
        %183 = sbr.rel (%p181) target = $region16
      $region15: #{_cos_attn_call.1} parent=5 // pred_region
        // Predicated region
        $region17: #{_cos_attn_call.1} parent=15 // pred_check
          %p184 = pneg %p51
        $region18: #{_cos_attn_call.1} parent=15 // pred_check_branch
          %186 = sbr.rel (%p184) target = $region20
        $region19: #{_cos_attn_call.1} parent=15 // pred_region
          %p187 = scmp.lt.s32.totalorder %s24, 1
          %s188 = scalar_select %p187, %s24, 1
          %p189 = scmp.lt.s32.totalorder %s25, 0
          %s190 = scalar_select %p189, %s25, 0
          %s191 = sadd.s32 %s190, %s188
          %s192 = smul.addr %s191, 8
          %s193 = scalar_lea.vmem %s0, %s192
        $region20: #{_cos_attn_call.1} parent=15 // pred_fallthru
          _
        // Predicated region
        $region21: #{_cos_attn_call.1} parent=15 // pred_check
          %p194 = pneg %p77
        $region22: #{_cos_attn_call.1} parent=15 // pred_check_branch
          %196 = sbr.rel (%p194) target = $region24
        $region23: #{_cos_attn_call.1} parent=15 // pred_region
          %p197 = scmp.lt.s32.totalorder %s24, 1
          %s198 = scalar_select %p197, %s24, 1
          %s199 = smul.addr %s198, 16
          %s200 = smul.addr %s199, 8
          %s201 = scalar_lea.vmem %s1, %s200
        $region24: #{_cos_attn_call.1} parent=15 // pred_fallthru
          _
        // Predicated region
        $region25: #{_cos_attn_call.1} parent=15 // pred_check
          %p202 = pneg %p103
        $region26: #{_cos_attn_call.1} parent=15 // pred_check_branch
          %204 = sbr.rel (%p202) target = $region28
        $region27: #{_cos_attn_call.1} parent=15 // pred_region
          %p205 = scmp.lt.s32.totalorder %s24, 1
          %s206 = scalar_select %p205, %s24, 1
          %s207 = smul.addr %s206, 2
          %s208 = scalar_lea.vmem %s2, %s207
        $region28: #{_cos_attn_call.1} parent=15 // pred_fallthru
          _
      $region16: #{_cos_attn_call.1} parent=5 // pred_fallthru
        _
      %p209 = scmp.le.s32.totalorder 1, %s17
      %p210 = scmp.lt.s32.totalorder %s17, 3
      %p211 = pnand %p209, %p210
      %p212 = pneg %p211
      // Predicated region
      $region29: #{_cos_attn_call.1} parent=5 // pred_check
        _
      $region30: #{_cos_attn_call.1} parent=5 // pred_check_branch
        %214 = sbr.rel (%p211) target = $region32
      $region31: #{_cos_attn_call.1} parent=5 // pred_region
        %s215 = ssub.s32 %s17, 1
        %p216 = scmp.lt.s32.totalorder %s26, 1
        %s217 = scalar_select %p216, %s26, 1
        %p218 = scmp.lt.s32.totalorder %s27, 0
        %s219 = scalar_select %p218, %s27, 0
        %s220 = sadd.s32 %s219, %s217
        %s221 = smul.addr %s220, 8
        %s222 = scalar_lea.vmem %s0, %s221
        %p223 = pneg %p57
        %p224 = pneg %p54
        %p225 = scmp.lt.s32.totalorder %s26, 1
        %s226 = scalar_select %p225, %s26, 1
        %s227 = smul.addr %s226, 16
        %s228 = smul.addr %s227, 8
        %s229 = scalar_lea.vmem %s1, %s228
        %p230 = pneg %p83
        %p231 = pneg %p80
        %p232 = scmp.lt.s32.totalorder %s26, 1
        %s233 = scalar_select %p232, %s26, 1
        %s234 = smul.addr %s233, 2
        %s235 = scalar_lea.vmem %s2, %s234
        %p236 = pneg %p109
        %p237 = pneg %p106
        %p238 = pneg %p137
        %p239 = pneg %p134
        %s240 = sand.u32 %s124, 1
        %s241 = scalar_lea.sflag [#allocation3], %s240
        %s242 = sand.u32 %s124, 1
        %s243 = smul.addr %s242, 8
        %s244 = scalar_lea.vmem [#allocation2], %s243
        %p245 = pneg %p165
        %p246 = pneg %p162
        %s247 = sand.u32 %s152, 1
        %s248 = scalar_lea.sflag [#allocation5], %s247
        %s249 = sand.u32 %s152, 1
        %s250 = smul.addr %s249, 8
        %s251 = scalar_lea.vmem [#allocation4], %s250
        %p252 = scmp.lt.s32.totalorder %s26, 1
        %s253 = scalar_select %p252, %s26, 1
        %p254 = scmp.lt.s32.totalorder %s27, 0
        %s255 = scalar_select %p254, %s27, 0
        %s256 = sadd.s32 %s255, %s253
        %s257 = smul.addr %s256, 8
        %s258 = scalar_lea.vmem %s0, %s257
        %p259 = scmp.lt.s32.totalorder %s26, 1
        %s260 = scalar_select %p259, %s26, 1
        %s261 = smul.addr %s260, 16
        %s262 = smul.addr %s261, 8
        %s263 = scalar_lea.vmem %s1, %s262
        %p264 = scmp.lt.s32.totalorder %s26, 1
        %s265 = scalar_select %p264, %s26, 1
        %s266 = smul.addr %s265, 2
        %s267 = scalar_lea.vmem %s2, %s266
        %v268 = vld [vmem:[%s258] sm:$0xff]
        %v269 = vld [vmem:[%s263] sm:$0xff]
        %v270 = vld [vmem:[%s263 + $0x8] sm:$0xff]
        %v271 = vld [vmem:[%s263 + $0x10] sm:$0xff]
        %v272 = vld [vmem:[%s263 + $0x18] sm:$0xff]
        %v273 = vld [vmem:[%s263 + $0x20] sm:$0xff]
        %v274 = vld [vmem:[%s263 + $0x28] sm:$0xff]
        %v275 = vld [vmem:[%s263 + $0x30] sm:$0xff]
        %v276 = vld [vmem:[%s263 + $0x38] sm:$0xff]
        %v277 = vld [vmem:[%s263 + $0x40] sm:$0xff]
        %v278 = vld [vmem:[%s263 + $0x48] sm:$0xff]
        %v279 = vld [vmem:[%s263 + $0x50] sm:$0xff]
        %v280 = vld [vmem:[%s263 + $0x58] sm:$0xff]
        %v281 = vld [vmem:[%s263 + $0x60] sm:$0xff]
        %v282 = vld [vmem:[%s263 + $0x68] sm:$0xff]
        %v283 = vld [vmem:[%s263 + $0x70] sm:$0xff]
        %v284 = vld [vmem:[%s263 + $0x78] sm:$0xff]
        %v285 = vld [vmem:[%s267] sm:$0x3]
        %vm286 = vcmp.gt.f32.partialorder %v285, 0.5
        %v287 = vmul.f32 %v268, %v268
        %288 = vadd.xlane.f32.xlu0 %v287
        %v289 = vpop.xlane.xlu0 %288
        %v290 = vmax.f32 %v289, 1e-16
        %v291 = vrsqrt.pop %v290
        %v292 = vmul.f32 %v268, %v291
        %293 = vmatprep.subr.mxu0 0.0
        %294 = vmatpush1.xpose.msra.mxu0 %v269
        %295 = vmatprep.subr.mxu0 0.0
        %296 = vmatpush1.xpose.msra.mxu0 %v270
        %297 = vmatprep.subr.mxu0 0.0
        %298 = vmatpush1.xpose.msra.mxu0 %v271
        %299 = vmatprep.subr.mxu0 0.0
        %300 = vmatpush1.xpose.msra.mxu0 %v272
        %301 = vmatprep.subr.mxu0 0.0
        %302 = vmatpush1.xpose.msra.mxu0 %v273
        %303 = vmatprep.subr.mxu0 0.0
        %304 = vmatpush1.xpose.msra.mxu0 %v274
        %305 = vmatprep.subr.mxu0 0.0
        %306 = vmatpush1.xpose.msra.mxu0 %v275
        %307 = vmatprep.subr.mxu0 0.0
        %308 = vmatpush1.xpose.msra.mxu0 %v276
        %309 = vmatprep.subr.mxu0 0.0
        %310 = vmatpush1.xpose.msra.mxu0 %v277
        %311 = vmatprep.subr.mxu0 0.0
        %312 = vmatpush1.xpose.msra.mxu0 %v278
        %313 = vmatprep.subr.mxu0 0.0
        %314 = vmatpush1.xpose.msra.mxu0 %v279
        %315 = vmatprep.subr.mxu0 0.0
        %316 = vmatpush1.xpose.msra.mxu0 %v280
        %317 = vmatprep.subr.mxu0 0.0
        %318 = vmatpush1.xpose.msra.mxu0 %v281
        %319 = vmatprep.subr.mxu0 0.0
        %320 = vmatpush1.xpose.msra.mxu0 %v282
        %321 = vmatprep.subr.mxu0 0.0
        %322 = vmatpush1.xpose.msra.mxu0 %v283
        %323 = vmatprep.subr.mxu0 0.0
        %324 = vmatpush1.xpose.msra.mxu0 %v284
        %325 = vmatprep.subr.mxu0 0.0
        %326 = vmatpush1.xpose.msra.mxu0 0.0
        %327 = vmatprep.subr.mxu0 0.0
        %328 = vmatpush1.xpose.msra.mxu0 0.0
        %329 = vmatprep.subr.mxu0 0.0
        %330 = vmatpush1.xpose.msra.mxu0 0.0
        %331 = vmatprep.subr.mxu0 0.0
        %332 = vmatpush1.xpose.msra.mxu0 0.0
        %333 = vmatprep.subr.mxu0 0.0
        %334 = vmatpush1.xpose.msra.mxu0 0.0
        %335 = vmatprep.subr.mxu0 0.0
        %336 = vmatpush1.xpose.msra.mxu0 0.0
        %337 = vmatprep.subr.mxu0 0.0
        %338 = vmatpush1.xpose.msra.mxu0 0.0
        %339 = vmatprep.subr.mxu0 0.0
        %340 = vmatpush1.xpose.msra.mxu0 0.0
        %341 = vmatprep.subr.mxu0 0.0
        %342 = vmatpush1.xpose.msra.mxu0 0.0
        %343 = vmatprep.subr.mxu0 0.0
        %344 = vmatpush1.xpose.msra.mxu0 0.0
        %345 = vmatprep.subr.mxu0 0.0
        %346 = vmatpush1.xpose.msra.mxu0 0.0
        %347 = vmatprep.subr.mxu0 0.0
        %348 = vmatpush1.xpose.msra.mxu0 0.0
        %349 = vmatprep.subr.mxu0 0.0
        %350 = vmatpush1.xpose.msra.mxu0 0.0
        %351 = vmatprep.subr.mxu0 0.0
        %352 = vmatpush1.xpose.msra.mxu0 0.0
        %353 = vmatprep.subr.mxu0 0.0
        %354 = vmatpush1.xpose.msra.mxu0 0.0
        %355 = vmatprep.subr.mxu0 0.0
        %356 = vmatpush1.xpose.msra.mxu0 0.0
        %357 = vmatprep.mubr.f32.mxu0 0.0
        %358 = vmatmul.mubr.f32.gmra.mrb[0].mxu0 %v292
        %v359 = vpop.f32.mrb[0].mxu0
        %v360 = vadd.f32 0.0, %v359
        %v361 = vpop.f32.mrb[0].mxu0
        %362 = vdwg.mxu0
        %v363 = vlaneseq
        %v364 = vshrl.u32 %v363, 7
        %v365 = vsub.s32 1, %v364
        %v366 = vrot.slane %v285, %v365
        %v367 = vmul.f32 %v360, %v366
        %v368 = vsel %vm286, 1, 0
        %v369 = vlaneseq
        %v370 = vshrl.u32 %v369, 7
        %v371 = vsub.s32 0, %v370
        %v372 = vrot.slane %v368, %v371
        %vm373 = vcmp.eq.s32.totalorder %v372, 1
        %v374 = vsel %vm373, -3.4028235e+38, %v367
        %375 = vmax.xlane.f32.xlu0 %v374
        %v376 = vpop.xlane.xlu0 %375
        %v377 = vsub.f32 %v374, %v376
        %v378 = vmul.f32 %v377, 1.442695
        %v379 = vpow.pop %v378
        %380 = vadd.xlane.f32.xlu0 %v379
        %v381 = vpop.xlane.xlu0 %380
        %v382 = vrcp.pop %v381
        %v383 = vmul.f32 %v379, %v382
        %v384 = vsel %vm373, 0.0, %v383
        %385 = vst [vmem:[%s251] sm:$0xff] %v384
        %386 = vmatprep.subr.mxu0 0.0
        %387 = vmatpush1.msra.mxu0 %v269
        %388 = vmatprep.subr.mxu0 0.0
        %389 = vmatpush1.msra.mxu0 %v270
        %390 = vmatprep.subr.mxu0 0.0
        %391 = vmatpush1.msra.mxu0 %v271
        %392 = vmatprep.subr.mxu0 0.0
        %393 = vmatpush1.msra.mxu0 %v272
        %394 = vmatprep.subr.mxu0 0.0
        %395 = vmatpush1.msra.mxu0 %v273
        %396 = vmatprep.subr.mxu0 0.0
        %397 = vmatpush1.msra.mxu0 %v274
        %398 = vmatprep.subr.mxu0 0.0
        %399 = vmatpush1.msra.mxu0 %v275
        %400 = vmatprep.subr.mxu0 0.0
        %401 = vmatpush1.msra.mxu0 %v276
        %402 = vmatprep.subr.mxu0 0.0
        %403 = vmatpush1.msra.mxu0 %v277
        %404 = vmatprep.subr.mxu0 0.0
        %405 = vmatpush1.msra.mxu0 %v278
        %406 = vmatprep.subr.mxu0 0.0
        %407 = vmatpush1.msra.mxu0 %v279
        %408 = vmatprep.subr.mxu0 0.0
        %409 = vmatpush1.msra.mxu0 %v280
        %410 = vmatprep.subr.mxu0 0.0
        %411 = vmatpush1.msra.mxu0 %v281
        %412 = vmatprep.subr.mxu0 0.0
        %413 = vmatpush1.msra.mxu0 %v282
        %414 = vmatprep.subr.mxu0 0.0
        %415 = vmatpush1.msra.mxu0 %v283
        %416 = vmatprep.subr.mxu0 0.0
        %417 = vmatpush1.msra.mxu0 %v284
        %418 = vmatprep.subr.mxu0 0.0
        %419 = vmatpush1.msra.mxu0 0.0
        %420 = vmatprep.subr.mxu0 0.0
        %421 = vmatpush1.msra.mxu0 0.0
        %422 = vmatprep.subr.mxu0 0.0
        %423 = vmatpush1.msra.mxu0 0.0
        %424 = vmatprep.subr.mxu0 0.0
        %425 = vmatpush1.msra.mxu0 0.0
        %426 = vmatprep.subr.mxu0 0.0
        %427 = vmatpush1.msra.mxu0 0.0
        %428 = vmatprep.subr.mxu0 0.0
        %429 = vmatpush1.msra.mxu0 0.0
        %430 = vmatprep.subr.mxu0 0.0
        %431 = vmatpush1.msra.mxu0 0.0
        %432 = vmatprep.subr.mxu0 0.0
        %433 = vmatpush1.msra.mxu0 0.0
        %434 = vmatprep.subr.mxu0 0.0
        %435 = vmatpush1.msra.mxu0 0.0
        %436 = vmatprep.subr.mxu0 0.0
        %437 = vmatpush1.msra.mxu0 0.0
        %438 = vmatprep.subr.mxu0 0.0
        %439 = vmatpush1.msra.mxu0 0.0
        %440 = vmatprep.subr.mxu0 0.0
        %441 = vmatpush1.msra.mxu0 0.0
        %442 = vmatprep.subr.mxu0 0.0
        %443 = vmatpush1.msra.mxu0 0.0
        %444 = vmatprep.subr.mxu0 0.0
        %445 = vmatpush1.msra.mxu0 0.0
        %446 = vmatprep.subr.mxu0 0.0
        %447 = vmatpush1.msra.mxu0 0.0
        %448 = vmatprep.subr.mxu0 0.0
        %449 = vmatpush1.msra.mxu0 0.0
        %450 = vmatprep.mubr.f32.mxu0 0.0
        %451 = vmatmul.mubr.f32.gmra.mrb[0].mxu0 %v384
        %v452 = vpop.f32.mrb[0].mxu0
        %v453 = vadd.f32 0.0, %v452
        %v454 = vpop.f32.mrb[0].mxu0
        %455 = vdwg.mxu0
        %456 = vst [vmem:[%s244] sm:$0xff] %v453
        %s457 = sand.u32 %s124, 1
        %s458 = scalar_lea.sflag [#allocation3], %s457
        %s459 = sand.u32 %s124, 1
        %s460 = smul.addr %s459, 8
        %s461 = scalar_lea.vmem [#allocation2], %s460
        %s462 = sand.u32 %s152, 1
        %s463 = scalar_lea.sflag [#allocation5], %s462
        %s464 = sand.u32 %s152, 1
        %s465 = smul.addr %s464, 8
        %s466 = scalar_lea.vmem [#allocation4], %s465
        // Predicated region
        $region33: #{_cos_attn_call.1} parent=31 // pred_check
          %p467 = pneg %p134
        $region34: #{_cos_attn_call.1} parent=31 // pred_check_branch
          %469 = sbr.rel (%p467) target = $region36
        $region35: #{_cos_attn_call.1} parent=31 // pred_region
          %s471 = ssub.s32 128, 128
          %472 = vsyncadd %s458, %s471
          %s473 = sadd.s32 %s27, %s26
          %s474 = smul.addr %s473, 128
          %s475 = scalar_lea.hbm %s3, %s474
          %s477 = sshll.u32 %s461, 4
          %s478 = int_to_ptr.vmem [resolvable:$true] %s477
          %480 = dma.vmem_to_hbm [thread:$0]  %s478, 128, %s475, %s458
        $region36: #{_cos_attn_call.1} parent=31 // pred_fallthru
          _
        // Predicated region
        $region37: #{_cos_attn_call.1} parent=31 // pred_check
          %p481 = pneg %p162
        $region38: #{_cos_attn_call.1} parent=31 // pred_check_branch
          %483 = sbr.rel (%p481) target = $region40
        $region39: #{_cos_attn_call.1} parent=31 // pred_region
          %s485 = ssub.s32 128, 128
          %486 = vsyncadd %s463, %s485
          %s487 = sadd.s32 %s27, %s26
          %s488 = smul.addr %s487, 128
          %s489 = scalar_lea.hbm %s4, %s488
          %s491 = sshll.u32 %s466, 4
          %s492 = int_to_ptr.vmem [resolvable:$true] %s491
          %494 = dma.vmem_to_hbm [thread:$0]  %s492, 128, %s489, %s463
        $region40: #{_cos_attn_call.1} parent=31 // pred_fallthru
          _
      $region32: #{_cos_attn_call.1} parent=5 // pred_fallthru
        _
      %p495 = scmp.le.s32.totalorder 2, %s17
      // Predicated region
      $region41: #{_cos_attn_call.1} parent=5 // pred_check
        %p496 = pneg %p495
      $region42: #{_cos_attn_call.1} parent=5 // pred_check_branch
        %498 = sbr.rel (%p496) target = $region44
      $region43: #{_cos_attn_call.1} parent=5 // pred_region
        %s499 = ssub.s32 %s17, 2
        // Predicated region
        $region45: #{_cos_attn_call.1} parent=43 // pred_check
          %p500 = pneg %p140
        $region46: #{_cos_attn_call.1} parent=43 // pred_check_branch
          %502 = sbr.rel (%p500) target = $region48
        $region47: #{_cos_attn_call.1} parent=43 // pred_region
          %s503 = sand.u32 %s125, 1
          %s504 = scalar_lea.sflag [#allocation3], %s503
          %s505 = sand.u32 %s125, 1
          %s506 = smul.addr %s505, 8
          %s507 = scalar_lea.vmem [#allocation2], %s506
          %508 = dma.done %s504, 128
        $region48: #{_cos_attn_call.1} parent=43 // pred_fallthru
          _
        // Predicated region
        $region49: #{_cos_attn_call.1} parent=43 // pred_check
          %p509 = pneg %p168
        $region50: #{_cos_attn_call.1} parent=43 // pred_check_branch
          %511 = sbr.rel (%p509) target = $region52
        $region51: #{_cos_attn_call.1} parent=43 // pred_region
          %s512 = sand.u32 %s153, 1
          %s513 = scalar_lea.sflag [#allocation5], %s512
          %s514 = sand.u32 %s153, 1
          %s515 = smul.addr %s514, 8
          %s516 = scalar_lea.vmem [#allocation4], %s515
          %517 = dma.done %s513, 128
        $region52: #{_cos_attn_call.1} parent=43 // pred_fallthru
          _
      $region44: #{_cos_attn_call.1} parent=5 // pred_fallthru
        _
    $region6: #{_cos_attn_call.1} parent=1 // loop_footer
      %s21 = sadd.s32 1, %s17
    $region7: #{_cos_attn_call.1} parent=1 // loop_footer_branch
      %16 = sbr.rel target = $region3
    $region8: #{_cos_attn_call.1} parent=1 // loop_exit
      _
    %518 = vsyncpa [#allocation3], 1
    %s519 = scalar_lea.sflag [#allocation3], 1
    %520 = vsyncpa %s519, 1
    %521 = vsyncpa [#allocation5], 1
    %s522 = scalar_lea.sflag [#allocation5], 1
    %523 = vsyncpa %s522, 1

</llo_original>
